<compile_context>
chip_gen: v5e
topology: v5e:2x2
jax: 0.10.0
libtpu: 0.0.40
codegen_flags: <defaults>
</compile_context>

<pallas_src>
import jax
import jax.numpy as jnp
from jax.experimental import pallas as pl
from jax.experimental.pallas import tpu as pltpu


def _round_up(x, m):
    return (x + m - 1) // m * m


def _largest_divisor_leq(n, target):
    d = max(1, min(n, target))
    while n % d != 0:
        d -= 1
    return d


def bahdanau_kernel(k_ref, v_ref, w_ref, o_ref, m_sc, l_sc, acc_sc):
    """One (batch-block, Lk-tile) step of the collapsed Bahdanau attention.

    k_ref: (bb, lk_t, d_k)   v_ref: (bb, lk_t, d_v)   w_ref: (1, d_k)
    o_ref: (bb, 1, d_v)      scratch: running max / denom / weighted-V (f32)
    """
    kv_step = pl.program_id(1)

    @pl.when(kv_step == 0)
    def _init():
        m_sc[...] = jnp.full_like(m_sc, -jnp.inf)
        l_sc[...] = jnp.zeros_like(l_sc)
        acc_sc[...] = jnp.zeros_like(acc_sc)

    k = k_ref[...]                                    # (bb, lk_t, d_k) input dtype
    v = v_ref[...]                                    # (bb, lk_t, d_v) input dtype
    w = w_ref[...]                                    # (1, d_k)        input dtype

    # Key projection: kw[b, j, 0] = w . k[b, j, :]
    # Multiply in the input dtype (bf16 VALU on v6e/v7x), accumulate in f32.
    # Lk stays on sublanes (trailing singleton lane dim) -> no XLU relayout.
    kw = jnp.sum((k * w[None, :, :]).astype(jnp.float32),
                 axis=-1, keepdims=True)              # (bb, lk_t, 1) f32

    # Online softmax over the key axis (shared by every query row -- header).
    m_prev = m_sc[...]                                # (bb, 1, 1)
    m_new = jnp.maximum(m_prev, jnp.max(kw, axis=1, keepdims=True))
    alpha = jnp.exp(m_prev - m_new)                   # (bb, 1, 1)
    e = jnp.exp(kw - m_new)                           # (bb, lk_t, 1) f32

    l_sc[...] = alpha * l_sc[...] + jnp.sum(e, axis=1, keepdims=True)
    pv = (e.astype(v.dtype) * v).astype(jnp.float32)  # mul in input dtype, acc f32
    acc_sc[...] = alpha * acc_sc[...] + jnp.sum(pv, axis=1, keepdims=True)
    m_sc[...] = m_new

    @pl.when(kv_step == pl.num_programs(1) - 1)
    def _finalize():
        # Exact divide: the handful of per-batch divisions is DMA-hidden.
        o_ref[...] = (acc_sc[...] / l_sc[...]).astype(o_ref.dtype)


def bahdanau_attention(query, key, value, weight, mask=None, *,
                       target_block_bytes=8 << 20,       # ~6-8 MiB HBM per step
                       vmem_block_budget_bytes=20 << 20):
    """query (B, Lq, d_k), key (B, Lk, d_k), value (B, Lk, d_v), weight (1, d_k)."""
    if mask is not None:
        # TODO(synk): masked path needs per-query-row scores; not wired in.
        raise NotImplementedError("mask is not supported by this kernel")

    B, Lq, d_k = query.shape
    _, Lk, _ = key.shape
    d_v = value.shape[-1]
    out_dtype = value.dtype

    itemsize = jnp.dtype(key.dtype).itemsize
    dk_pad = _round_up(d_k, 128)          # lane padding (vreg = [8, 128] x 32b)
    dv_pad = _round_up(d_v, 128)

    # ---- Lk tiling fallback (long context): keep blocks near roofline size
    #      instead of shrinking bb or blowing the v7x VMEM budget. ------------
    lk_tile = Lk
    per_batch_hbm = Lk * (d_k + d_v) * itemsize
    if per_batch_hbm > target_block_bytes and Lk > 8:
        rows_hbm = target_block_bytes // max((d_k + d_v) * itemsize, 1)
        rows_vmem = (vmem_block_budget_bytes // 2) // max((dk_pad + dv_pad) * itemsize, 1)
        t = min(Lk, max(8, min(rows_hbm, rows_vmem)))
        t = (t // 8) * 8
        while t >= 8 and Lk % t != 0:      # exact tiles only (no softmax masking)
            t -= 8
        if t >= 8:
            lk_tile = t
    nk = Lk // lk_tile

    # ---- how many batches to fuse per grid step -----------------------------
    hbm_step = lk_tile * (d_k + d_v) * itemsize + d_v * itemsize
    vmem_step = (_round_up(lk_tile, 8) * (dk_pad + dv_pad) * itemsize
                 + dv_pad * itemsize)      # lane-padded VMEM bytes per batch

    bb = max(1, target_block_bytes // max(hbm_step, 1))                      # HBM target
    bb = min(bb, max(1, vmem_block_budget_bytes // max(2 * vmem_step, 1)))   # 2x dbl-buffer
    # Enough grid steps so both v7x TensorCores get >= 2-4 pipelined steps each.
    min_nb = 2 if nk >= 4 else 8
    bb = min(bb, max(1, B // min(B, min_nb)))

    # Exact batch blocks via a near-target divisor; otherwise pad B a little
    # rather than collapsing to tiny, per-step-overhead-bound blocks.
    bb_div = _largest_divisor_leq(B, bb)
    if 2 * bb_div >= bb:
        bb, Bp = bb_div, B
    else:
        Bp = _round_up(B, bb)
    key_in, value_in = key, value
    if Bp != B:
        pad = Bp - B                       # zero keys -> uniform softmax, ctx = 0
        key_in = jnp.pad(key, ((0, pad), (0, 0), (0, 0)))
        value_in = jnp.pad(value, ((0, pad), (0, 0), (0, 0)))
    nb = Bp // bb

    # Scoped-VMEM limit sized to the real double-buffered footprint (v5e's
    # default is only 16 MiB); clamped well under v7x's 64 MiB physical VMEM.
    f32_tmp = 2 * bb * _round_up(lk_tile, 8) * max(dk_pad, dv_pad) * 4
    vmem_need = 2 * bb * vmem_step + f32_tmp + bb * (dv_pad + 256) * 4 + (1 << 20)
    vmem_limit = int(min(48 << 20, max(32 << 20, vmem_need)))

    ctx = pl.pallas_call(
        bahdanau_kernel,
        out_shape=jax.ShapeDtypeStruct((Bp, 1, d_v), out_dtype),
        grid_spec=pltpu.PrefetchScalarGridSpec(
            num_scalar_prefetch=0,
            grid=(nb, nk),
            in_specs=[
                pl.BlockSpec((bb, lk_tile, d_k), lambda b, kv: (b, kv, 0)),
                pl.BlockSpec((bb, lk_tile, d_v), lambda b, kv: (b, kv, 0)),
                # same (0, 0) block every step -> stays VMEM-resident, no re-DMA
                pl.BlockSpec((1, d_k), lambda b, kv: (0, 0)),
            ],
            out_specs=pl.BlockSpec((bb, 1, d_v), lambda b, kv: (b, 0, 0)),
            scratch_shapes=[
                pltpu.VMEM((bb, 1, 1), jnp.float32),    # running max
                pltpu.VMEM((bb, 1, 1), jnp.float32),    # running denominator
                pltpu.VMEM((bb, 1, d_v), jnp.float32),  # running weighted V
            ],
        ),
        compiler_params=pltpu.CompilerParams(
            dimension_semantics=("parallel", "arbitrary"),
            vmem_limit_bytes=vmem_limit,
        ),
    )(key_in, value_in, weight.astype(key.dtype))

    # Every query row shares the same attention weights (the per-row constant
    # w.q_i cancels in the softmax), so broadcast the per-batch context vector
    # over Lq in the wrapper: the kernel writes B*d_v bytes instead of B*Lq*d_v.
    ctx = ctx[:B, 0, :]                                     # (B, d_v)
    return jnp.broadcast_to(ctx[:, None, :], (B, Lq, d_v))


def _reference(query, key, value, weight):
    # plain-JAX mirror of the PyTorch forward (mask=None)
    summed = query[:, :, None, :] + key[:, None, :, :]          # (B, Lq, Lk, d_k)
    scores = jnp.einsum("bqkd,od->bqko", summed, weight)[..., 0]
    p = jax.nn.softmax(scores, axis=-1)
    return jnp.einsum("bqk,bkd->bqd", p, value)


if __name__ == "__main__":
    B, Lq, Lk, d_k, d_v = 2, 8, 8, 32, 32

    root = jax.random.PRNGKey(0)
    k_query, k_key, k_value, k_weight = jax.random.split(root, 4)

    query = jax.random.normal(k_query, (B, Lq, d_k), dtype=jnp.float32)
    key = jax.random.normal(k_key, (B, Lk, d_k), dtype=jnp.float32)
    value = jax.random.normal(k_value, (B, Lk, d_v), dtype=jnp.float32)

    # nn.Linear(d_k, 1, bias=False) default init: U(-1/sqrt(d_k), 1/sqrt(d_k)),
    # weight shape (1, d_k)
    bound = 1.0 / (d_k ** 0.5)
    weight = jax.random.uniform(k_weight, (1, d_k), dtype=jnp.float32,
                                minval=-bound, maxval=bound)

    out = bahdanau_attention(query, key, value, weight)
    out = jax.block_until_ready(out)

    ref = _reference(query, key, value, weight)
    assert out.shape == (B, Lq, d_v)
    assert jnp.allclose(out, ref, atol=1e-4, rtol=1e-4), "mismatch vs reference"

    print("KERNEL_OK")
</pallas_src>

<mosaic_0001>
module attributes {stable_mosaic.version = 11 : i64} {
  func.func @bahdanau_kernel(%arg0: i32, %arg1: i32, %arg2: memref<1x8x32xf32, #tpu.memory_space<vmem>>, %arg3: memref<1x8x32xf32, #tpu.memory_space<vmem>>, %arg4: memref<1x32xf32, #tpu.memory_space<vmem>>, %arg5: memref<1x1x32xf32, #tpu.memory_space<vmem>>, %arg6: memref<1x1x1xf32, #tpu.memory_space<vmem>>, %arg7: memref<1x1x1xf32, #tpu.memory_space<vmem>>, %arg8: memref<1x1x32xf32, #tpu.memory_space<vmem>>) attributes {dimension_semantics = [#tpu.dimension_semantics<parallel>, #tpu.dimension_semantics<arbitrary>], iteration_bounds = array<i64: 2, 1>, scalar_prefetch = 0 : i64, scratch_operands = 3 : i64, tpu.core_type = #tpu.core_type<tc>, window_params = [{transform_indices = @transform_0, window_bounds = array<i64: 1, 8, 32>}, {transform_indices = @transform_1, window_bounds = array<i64: 1, 8, 32>}, {pipeline_mode = #tpu.pipeline_mode<synchronous>, transform_indices = @transform_2, window_bounds = array<i64: 1, 32>}, {transform_indices = @transform_3, window_bounds = array<i64: 1, 1, 32>}]} {
    %c0_i32 = arith.constant 0 : i32
    %0 = arith.cmpi eq, %arg1, %c0_i32 : i32
    %1 = arith.extui %0 : i1 to i32
    %c0_i32_0 = arith.constant 0 : i32
    %2 = arith.cmpi ne, %1, %c0_i32_0 : i32
    scf.if %2 {
      %cst_31 = arith.constant 0xFF800000 : f32
      %39 = vector.broadcast %cst_31 : f32 to vector<1x1x1xf32>
      %c0_32 = arith.constant 0 : index
      %c0_33 = arith.constant 0 : index
      %c0_34 = arith.constant 0 : index
      %40 = vector.load %arg6[%c0_32, %c0_33, %c0_34] : memref<1x1x1xf32, #tpu.memory_space<vmem>>, vector<1x1x1xf32>
      tpu.vector_store %arg6[%c0_32, %c0_33, %c0_34], %39 {strides = array<i32>} : memref<1x1x1xf32, #tpu.memory_space<vmem>>, vector<1x1x1xf32>,
      %cst_35 = arith.constant 0.000000e+00 : f32
      %41 = vector.broadcast %cst_35 : f32 to vector<1x1x1xf32>
      %c0_36 = arith.constant 0 : index
      %c0_37 = arith.constant 0 : index
      %c0_38 = arith.constant 0 : index
      %42 = vector.load %arg7[%c0_36, %c0_37, %c0_38] : memref<1x1x1xf32, #tpu.memory_space<vmem>>, vector<1x1x1xf32>
      tpu.vector_store %arg7[%c0_36, %c0_37, %c0_38], %41 {strides = array<i32>} : memref<1x1x1xf32, #tpu.memory_space<vmem>>, vector<1x1x1xf32>,
      %cst_39 = arith.constant 0.000000e+00 : f32
      %43 = vector.broadcast %cst_39 : f32 to vector<1x1x32xf32>
      %c0_40 = arith.constant 0 : index
      %c0_41 = arith.constant 0 : index
      %c0_42 = arith.constant 0 : index
      %44 = vector.load %arg8[%c0_40, %c0_41, %c0_42] : memref<1x1x32xf32, #tpu.memory_space<vmem>>, vector<1x1x32xf32>
      tpu.vector_store %arg8[%c0_40, %c0_41, %c0_42], %43 {strides = array<i32>} : memref<1x1x32xf32, #tpu.memory_space<vmem>>, vector<1x1x32xf32>,
    } else {
    }
    %c0 = arith.constant 0 : index
    %c0_1 = arith.constant 0 : index
    %c0_2 = arith.constant 0 : index
    %3 = vector.load %arg2[%c0, %c0_1, %c0_2] : memref<1x8x32xf32, #tpu.memory_space<vmem>>, vector<1x8x32xf32>
    %c0_3 = arith.constant 0 : index
    %c0_4 = arith.constant 0 : index
    %c0_5 = arith.constant 0 : index
    %4 = vector.load %arg3[%c0_3, %c0_4, %c0_5] : memref<1x8x32xf32, #tpu.memory_space<vmem>>, vector<1x8x32xf32>
    %c0_6 = arith.constant 0 : index
    %c0_7 = arith.constant 0 : index
    %5 = vector.load %arg4[%c0_6, %c0_7] : memref<1x32xf32, #tpu.memory_space<vmem>>, vector<1x32xf32>
    %6 = vector.shape_cast %5 : vector<1x32xf32> to vector<1x1x32xf32>
    %7 = vector.broadcast %6 : vector<1x1x32xf32> to vector<1x8x32xf32>
    %8 = arith.mulf %3, %7 : vector<1x8x32xf32>
    %cst = arith.constant dense<0.000000e+00> : vector<1x8xf32>
    %9 = vector.multi_reduction <add>, %8, %cst [2] : vector<1x8x32xf32> to vector<1x8xf32>
    %10 = vector.shape_cast %9 : vector<1x8xf32> to vector<1x8x1xf32>
    %c0_8 = arith.constant 0 : index
    %c0_9 = arith.constant 0 : index
    %c0_10 = arith.constant 0 : index
    %11 = vector.load %arg6[%c0_8, %c0_9, %c0_10] : memref<1x1x1xf32, #tpu.memory_space<vmem>>, vector<1x1x1xf32>
    %cst_11 = arith.constant dense<0xFF800000> : vector<1x1xf32>
    %12 = vector.multi_reduction <maximumf>, %10, %cst_11 [1] : vector<1x8x1xf32> to vector<1x1xf32>
    %13 = vector.shape_cast %12 : vector<1x1xf32> to vector<1x1x1xf32>
    %14 = arith.maximumf %11, %13 : vector<1x1x1xf32>
    %15 = arith.subf %11, %14 : vector<1x1x1xf32>
    %16 = math.exp %15 : vector<1x1x1xf32>
    %17 = vector.broadcast %14 : vector<1x1x1xf32> to vector<1x8x1xf32>
    %18 = arith.subf %10, %17 : vector<1x8x1xf32>
    %19 = math.exp %18 : vector<1x8x1xf32>
    %c0_12 = arith.constant 0 : index
    %c0_13 = arith.constant 0 : index
    %c0_14 = arith.constant 0 : index
    %20 = vector.load %arg7[%c0_12, %c0_13, %c0_14] : memref<1x1x1xf32, #tpu.memory_space<vmem>>, vector<1x1x1xf32>
    %21 = arith.mulf %16, %20 : vector<1x1x1xf32>
    %cst_15 = arith.constant dense<0.000000e+00> : vector<1x1xf32>
    %22 = vector.multi_reduction <add>, %19, %cst_15 [1] : vector<1x8x1xf32> to vector<1x1xf32>
    %23 = vector.shape_cast %22 : vector<1x1xf32> to vector<1x1x1xf32>
    %24 = arith.addf %21, %23 : vector<1x1x1xf32>
    %c0_16 = arith.constant 0 : index
    %c0_17 = arith.constant 0 : index
    %c0_18 = arith.constant 0 : index
    %25 = vector.load %arg7[%c0_16, %c0_17, %c0_18] : memref<1x1x1xf32, #tpu.memory_space<vmem>>, vector<1x1x1xf32>
    tpu.vector_store %arg7[%c0_16, %c0_17, %c0_18], %24 {strides = array<i32>} : memref<1x1x1xf32, #tpu.memory_space<vmem>>, vector<1x1x1xf32>,
    %26 = vector.broadcast %19 : vector<1x8x1xf32> to vector<1x8x32xf32>
    %27 = arith.mulf %26, %4 : vector<1x8x32xf32>
    %c0_19 = arith.constant 0 : index
    %c0_20 = arith.constant 0 : index
    %c0_21 = arith.constant 0 : index
    %28 = vector.load %arg8[%c0_19, %c0_20, %c0_21] : memref<1x1x32xf32, #tpu.memory_space<vmem>>, vector<1x1x32xf32>
    %29 = vector.broadcast %16 : vector<1x1x1xf32> to vector<1x1x32xf32>
    %30 = arith.mulf %29, %28 : vector<1x1x32xf32>
    %cst_22 = arith.constant dense<0.000000e+00> : vector<1x32xf32>
    %31 = vector.multi_reduction <add>, %27, %cst_22 [1] : vector<1x8x32xf32> to vector<1x32xf32>
    %32 = vector.shape_cast %31 : vector<1x32xf32> to vector<1x1x32xf32>
    %33 = arith.addf %30, %32 : vector<1x1x32xf32>
    %c0_23 = arith.constant 0 : index
    %c0_24 = arith.constant 0 : index
    %c0_25 = arith.constant 0 : index
    %34 = vector.load %arg8[%c0_23, %c0_24, %c0_25] : memref<1x1x32xf32, #tpu.memory_space<vmem>>, vector<1x1x32xf32>
    tpu.vector_store %arg8[%c0_23, %c0_24, %c0_25], %33 {strides = array<i32>} : memref<1x1x32xf32, #tpu.memory_space<vmem>>, vector<1x1x32xf32>,
    %c0_26 = arith.constant 0 : index
    %c0_27 = arith.constant 0 : index
    %c0_28 = arith.constant 0 : index
    %35 = vector.load %arg6[%c0_26, %c0_27, %c0_28] : memref<1x1x1xf32, #tpu.memory_space<vmem>>, vector<1x1x1xf32>
    tpu.vector_store %arg6[%c0_26, %c0_27, %c0_28], %14 {strides = array<i32>} : memref<1x1x1xf32, #tpu.memory_space<vmem>>, vector<1x1x1xf32>,
    %c0_i32_29 = arith.constant 0 : i32
    %36 = arith.cmpi eq, %arg1, %c0_i32_29 : i32
    %37 = arith.extui %36 : i1 to i32
    %c0_i32_30 = arith.constant 0 : i32
    %38 = arith.cmpi ne, %37, %c0_i32_30 : i32
    scf.if %38 {
      %c0_31 = arith.constant 0 : index
      %c0_32 = arith.constant 0 : index
      %c0_33 = arith.constant 0 : index
      %39 = vector.load %arg8[%c0_31, %c0_32, %c0_33] : memref<1x1x32xf32, #tpu.memory_space<vmem>>, vector<1x1x32xf32>
      %c0_34 = arith.constant 0 : index
      %c0_35 = arith.constant 0 : index
      %c0_36 = arith.constant 0 : index
      %40 = vector.load %arg7[%c0_34, %c0_35, %c0_36] : memref<1x1x1xf32, #tpu.memory_space<vmem>>, vector<1x1x1xf32>
      %41 = vector.broadcast %40 : vector<1x1x1xf32> to vector<1x1x32xf32>
      %42 = arith.divf %39, %41 : vector<1x1x32xf32>
      %c0_37 = arith.constant 0 : index
      %c0_38 = arith.constant 0 : index
      %c0_39 = arith.constant 0 : index
      %43 = vector.load %arg5[%c0_37, %c0_38, %c0_39] : memref<1x1x32xf32, #tpu.memory_space<vmem>>, vector<1x1x32xf32>
      tpu.vector_store %arg5[%c0_37, %c0_38, %c0_39], %42 {strides = array<i32>} : memref<1x1x32xf32, #tpu.memory_space<vmem>>, vector<1x1x32xf32>,
    } else {
    }
    return
  }
  func.func @transform_0(%arg0: i32, %arg1: i32) -> (i32, i32, i32) {
    %c0_i32 = arith.constant 0 : i32
    %c0_i32_0 = arith.constant 0 : i32
    return %arg0, %arg1, %c0_i32 : i32, i32, i32
  }
  func.func @transform_1(%arg0: i32, %arg1: i32) -> (i32, i32, i32) {
    %c0_i32 = arith.constant 0 : i32
    %c0_i32_0 = arith.constant 0 : i32
    return %arg0, %arg1, %c0_i32 : i32, i32, i32
  }
  func.func @transform_2(%arg0: i32, %arg1: i32) -> (i32, i32) {
    %c0_i32 = arith.constant 0 : i32
    %c0_i32_0 = arith.constant 0 : i32
    %c0_i32_1 = arith.constant 0 : i32
    return %c0_i32, %c0_i32_0 : i32, i32
  }
  func.func @transform_3(%arg0: i32, %arg1: i32) -> (i32, i32, i32) {
    %c0_i32 = arith.constant 0 : i32
    %c0_i32_0 = arith.constant 0 : i32
    %c0_i32_1 = arith.constant 0 : i32
    return %arg0, %c0_i32, %c0_i32_0 : i32, i32, i32
  }
}

</mosaic_0001>

<llo_original>
// kernel: tpu_custom_call.1
$region0: #{tpu_custom_call.1}
  #allocation0 [shape = 'u32[]', space=smem, size = 0x4, offset = 0x4, fixed_abs, tag = 'smem constant byte address 0x4 - core index']
  #allocation1 [shape = 'u32[72,128]{1,0:T(1,128)}', space=vmem, size = 0x9000, scoped, tag = 'internal scratch']
  #allocation2 [shape = 'f32[1,1,1]{2,1,0:T(1,128)}', space=vmem, size = 0x200, scoped, tag = 'scratch operand']
  #allocation3 [shape = 'f32[1,1,1]{2,1,0:T(1,128)}', space=vmem, size = 0x200, scoped, tag = 'scratch operand']
  #allocation4 [shape = 'f32[1,1,32]{2,1,0:T(1,128)}', space=vmem, size = 0x200, scoped, tag = 'scratch operand']
  %s0 = inlined_call_operand.hbm [shape: f32[2,8,32], index: 0, kind: input, shape index: {}]
  %s1 = inlined_call_operand.hbm [shape: f32[2,8,32], index: 1, kind: input, shape index: {}]
  %s2 = inlined_call_operand.vmem [shape: f32[1,32], index: 2, kind: input, shape index: {}]
  %s3 = inlined_call_operand.hbm [shape: f32[2,1,32], index: 3, kind: output, shape index: {}]
  %s4 = sld [smem:[#allocation0]]
  $region61: #{tpu_custom_call.1} parent=0
    _
  %s6 = ssub.s32 1, %s4
  %s7 = scalar_select 0, %s6, %s4
  $region1: #{tpu_custom_call.1} parent=0
    #allocation5 [shape = 'u8[8192]{0}', space=vmem, size = 0x2000, scoped, tag = 'input window, operand 0']
    #allocation6 [shape = 's32[2]{0}', space=sflag, size = 0x8, scoped, tag = 'scoped memory for tpu_custom_call.1']
    #allocation7 [shape = 's32[2]{0}', space=sflag, size = 0x8, scoped, tag = 'scoped memory for tpu_custom_call.1']
    #allocation8 [shape = 'u8[8192]{0}', space=vmem, size = 0x2000, scoped, tag = 'input window, operand 1']
    #allocation9 [shape = 's32[2]{0}', space=sflag, size = 0x8, scoped, tag = 'scoped memory for tpu_custom_call.1']
    #allocation10 [shape = 'u8[1024]{0}', space=vmem, size = 0x400, scoped, tag = 'output window, operand 0']
    %8 = vsyncpa [#allocation6], 0
    %s9 = scalar_lea.sflag [#allocation6], 1
    %10 = vsyncpa %s9, 0
    %11 = vsyncpa [#allocation9], 0
    %s12 = scalar_lea.sflag [#allocation9], 1
    %13 = vsyncpa %s12, 0
    %14 = vsyncpa [#allocation7], 0
    %s15 = scalar_lea.sflag [#allocation7], 1
    %16 = vsyncpa %s15, 0
    loop: start=0, step=1, limit=4
    $region2: #{tpu_custom_call.1} parent=1 // loop_pre_header
      _
    $region3: #{tpu_custom_call.1} parent=1 // loop_header
      %s18 = sphi 0, %s22
      %p19 = scmp.ge.s32.totalorder %s18, 4
      %s25 = sphi 0, %s37
      %s26 = sphi 0, %s33
      %s27 = sphi 0, %s25
      %s28 = sphi 0, %s26
      %s29 = sphi 0, %s27
      %s30 = sphi 0, %s28
      %s42 = sphi 0, %s44
      %s45 = sphi 0, %s42
      %s46 = sphi 0, %s45
      %s62 = sphi 0, %s46
      %s70 = sphi 0, %s72
      %s73 = sphi 0, %s70
      %s74 = sphi 0, %s73
      %s90 = sphi 0, %s74
      %s94 = sphi 0, %s94
      %s96 = sphi 0, %s94
      %s97 = sphi 0, %s96
      %s111 = sphi 0, %s97
      %s117 = sphi 0, %s119
      %s120 = sphi 0, %s117
      %s121 = sphi 0, %s120
      %s137 = sphi 0, %s121
    $region4: #{tpu_custom_call.1} parent=1 // loop_header_branch
      %21 = sbr.rel (%p19) target = $region8
    $region5: #{tpu_custom_call.1} parent=1 // loop_body
      %s23 = ssub.s32 %s18, 1
      %s24 = ssub.s32 %s18, 2
      %s31 = sadd.s32 1, %s26
      %p32 = scmp.ge.s32.totalorder %s31, 1
      %s33 = scalar_select %p32, 0, %s31
      %s34 = sadd.s32 1, %s25
      %s35 = scalar_select %p32, %s34, %s25
      %p36 = scmp.ge.s32.totalorder %s35, 2
      %s37 = scalar_select %p36, 0, %s35
      %s38 = ssub.s32 %s25, %s37
      %s39 = ssub.s32 %s26, %s33
      %s40 = sor.u32 %s38, %s39
      %p41 = scmp.eq.s32.totalorder %s40, 0
      %s43 = sadd.s32 %s42, 1
      %s44 = scalar_select %p41, %s42, %s43
      %p47 = pneg %p41
      %p48 = scmp.eq.s32.totalorder %s18, 1
      %p49 = por %p47, %p48
      %p50 = scmp.ne.s32.totalorder %s42, %s45
      %p51 = scmp.eq.s32.totalorder %s18, 0
      %p52 = por %p50, %p51
      %p53 = scmp.ne.s32.totalorder %s42, %s45
      %p54 = scmp.eq.s32.totalorder %s23, 1
      %p55 = por %p53, %p54
      %p56 = scmp.ne.s32.totalorder %s45, %s46
      %p57 = scmp.eq.s32.totalorder %s23, 0
      %p58 = por %p56, %p57
      %p59 = scmp.ne.s32.totalorder %s45, %s46
      %p60 = scmp.eq.s32.totalorder %s24, 1
      %p61 = por %p59, %p60
      %p63 = scmp.ne.s32.totalorder %s46, %s62
      %p64 = scmp.eq.s32.totalorder %s24, 0
      %p65 = por %p63, %p64
      %s66 = ssub.s32 %s25, %s37
      %s67 = ssub.s32 %s26, %s33
      %s68 = sor.u32 %s66, %s67
      %p69 = scmp.eq.s32.totalorder %s68, 0
      %s71 = sadd.s32 %s70, 1
      %s72 = scalar_select %p69, %s70, %s71
      %p75 = pneg %p69
      %p76 = scmp.eq.s32.totalorder %s18, 1
      %p77 = por %p75, %p76
      %p78 = scmp.ne.s32.totalorder %s70, %s73
      %p79 = scmp.eq.s32.totalorder %s18, 0
      %p80 = por %p78, %p79
      %p81 = scmp.ne.s32.totalorder %s70, %s73
      %p82 = scmp.eq.s32.totalorder %s23, 1
      %p83 = por %p81, %p82
      %p84 = scmp.ne.s32.totalorder %s73, %s74
      %p85 = scmp.eq.s32.totalorder %s23, 0
      %p86 = por %p84, %p85
      %p87 = scmp.ne.s32.totalorder %s73, %s74
      %p88 = scmp.eq.s32.totalorder %s24, 1
      %p89 = por %p87, %p88
      %p91 = scmp.ne.s32.totalorder %s74, %s90
      %p92 = scmp.eq.s32.totalorder %s24, 0
      %p93 = por %p91, %p92
      %s95 = sadd.s32 %s94, 1
      %p98 = scmp.eq.s32.totalorder %s18, 1
      %p99 = scmp.ne.s32.totalorder %s94, %s96
      %p100 = scmp.eq.s32.totalorder %s18, 0
      %p101 = por %p99, %p100
      %p102 = scmp.ne.s32.totalorder %s94, %s96
      %p103 = scmp.eq.s32.totalorder %s23, 1
      %p104 = por %p102, %p103
      %p105 = scmp.ne.s32.totalorder %s96, %s97
      %p106 = scmp.eq.s32.totalorder %s23, 0
      %p107 = por %p105, %p106
      %p108 = scmp.ne.s32.totalorder %s96, %s97
      %p109 = scmp.eq.s32.totalorder %s24, 1
      %p110 = por %p108, %p109
      %p112 = scmp.ne.s32.totalorder %s97, %s111
      %p113 = scmp.eq.s32.totalorder %s24, 0
      %p114 = por %p112, %p113
      %s115 = ssub.s32 %s25, %s37
      %p116 = scmp.eq.s32.totalorder %s115, 0
      %s118 = sadd.s32 %s117, 1
      %s119 = scalar_select %p116, %s117, %s118
      %p122 = pneg %p116
      %p123 = scmp.eq.s32.totalorder %s18, 1
      %p124 = por %p122, %p123
      %p125 = scmp.ne.s32.totalorder %s117, %s120
      %p126 = scmp.eq.s32.totalorder %s18, 0
      %p127 = por %p125, %p126
      %p128 = scmp.ne.s32.totalorder %s117, %s120
      %p129 = scmp.eq.s32.totalorder %s23, 1
      %p130 = por %p128, %p129
      %p131 = scmp.ne.s32.totalorder %s120, %s121
      %p132 = scmp.eq.s32.totalorder %s23, 0
      %p133 = por %p131, %p132
      %p134 = scmp.ne.s32.totalorder %s120, %s121
      %p135 = scmp.eq.s32.totalorder %s24, 1
      %p136 = por %p134, %p135
      %p138 = scmp.ne.s32.totalorder %s121, %s137
      %p139 = scmp.eq.s32.totalorder %s24, 0
      %p140 = por %p138, %p139
      %p141 = scmp.le.s32.totalorder 1, %s18
      %p142 = scmp.lt.s32.totalorder %s18, 3
      %p143 = pnand %p141, %p142
      %p144 = pneg %p143
      // Predicated region
      $region9: #{tpu_custom_call.1} parent=5 // pred_check
        _
      $region10: #{tpu_custom_call.1} parent=5 // pred_check_branch
        %146 = sbr.rel (%p143) target = $region12
      $region11: #{tpu_custom_call.1} parent=5 // pred_region
        %s147 = ssub.s32 %s18, 1
        // Predicated region
        $region13: #{tpu_custom_call.1} parent=11 // pred_check
          %p148 = pneg %p107
        $region14: #{tpu_custom_call.1} parent=11 // pred_check_branch
          %150 = sbr.rel (%p148) target = $region16
        $region15: #{tpu_custom_call.1} parent=11 // pred_region
          _
        $region16: #{tpu_custom_call.1} parent=11 // pred_fallthru
          _
      $region12: #{tpu_custom_call.1} parent=5 // pred_fallthru
        _
      %p151 = scmp.lt.s32.totalorder %s18, 2
      // Predicated region
      $region17: #{tpu_custom_call.1} parent=5 // pred_check
        %p152 = pneg %p151
      $region18: #{tpu_custom_call.1} parent=5 // pred_check_branch
        %154 = sbr.rel (%p152) target = $region20
      $region19: #{tpu_custom_call.1} parent=5 // pred_region
        // Predicated region
        $region21: #{tpu_custom_call.1} parent=19 // pred_check
          %p155 = pneg %p52
        $region22: #{tpu_custom_call.1} parent=19 // pred_check_branch
          %157 = sbr.rel (%p155) target = $region24
        $region23: #{tpu_custom_call.1} parent=19 // pred_region
          %s158 = sand.u32 %s42, 1
          %s159 = scalar_lea.sflag [#allocation6], %s158
          %s160 = sand.u32 %s42, 1
          %s161 = smul.addr %s160, 8
          %s162 = scalar_lea.vmem [#allocation5], %s161
          %164 = vsyncadd %s159, 0
          %s165 = sadd.s32 %s26, %s25
          %s166 = smul.addr %s165, 8
          %s167 = scalar_lea.hbm %s0, %s166
          %s169 = sshll.u32 %s167, 4
          %s170 = int_to_ptr.hbm [resolvable:$true] %s169
          %s171 = sshll.u32 %s162, 4
          %s172 = int_to_ptr.vmem [resolvable:$true] %s171
          %174 = dma.hbm_to_vmem [thread:$0]  %s170, 128, %s172, %s159
        $region24: #{tpu_custom_call.1} parent=19 // pred_fallthru
          _
        // Predicated region
        $region25: #{tpu_custom_call.1} parent=19 // pred_check
          %p175 = pneg %p80
        $region26: #{tpu_custom_call.1} parent=19 // pred_check_branch
          %177 = sbr.rel (%p175) target = $region28
        $region27: #{tpu_custom_call.1} parent=19 // pred_region
          %s178 = sand.u32 %s70, 1
          %s179 = scalar_lea.sflag [#allocation9], %s178
          %s180 = sand.u32 %s70, 1
          %s181 = smul.addr %s180, 8
          %s182 = scalar_lea.vmem [#allocation8], %s181
          %184 = vsyncadd %s179, 0
          %s185 = sadd.s32 %s26, %s25
          %s186 = smul.addr %s185, 8
          %s187 = scalar_lea.hbm %s1, %s186
          %s189 = sshll.u32 %s187, 4
          %s190 = int_to_ptr.hbm [resolvable:$true] %s189
          %s191 = sshll.u32 %s182, 4
          %s192 = int_to_ptr.vmem [resolvable:$true] %s191
          %194 = dma.hbm_to_vmem [thread:$0]  %s190, 128, %s192, %s179
        $region28: #{tpu_custom_call.1} parent=19 // pred_fallthru
          _
      $region20: #{tpu_custom_call.1} parent=5 // pred_fallthru
        _
      %p195 = scmp.le.s32.totalorder 1, %s18
      %p196 = scmp.lt.s32.totalorder %s18, 3
      %p197 = pnand %p195, %p196
      %p198 = pneg %p197
      // Predicated region
      $region29: #{tpu_custom_call.1} parent=5 // pred_check
        _
      $region30: #{tpu_custom_call.1} parent=5 // pred_check_branch
        %200 = sbr.rel (%p197) target = $region32
      $region31: #{tpu_custom_call.1} parent=5 // pred_region
        %s201 = ssub.s32 %s18, 1
        %s202 = sand.u32 %s45, 1
        %s203 = scalar_lea.sflag [#allocation6], %s202
        %s204 = sand.u32 %s45, 1
        %s205 = smul.addr %s204, 8
        %s206 = scalar_lea.vmem [#allocation5], %s205
        // Predicated region
        $region33: #{tpu_custom_call.1} parent=31 // pred_check
          %p207 = pneg %p58
        $region34: #{tpu_custom_call.1} parent=31 // pred_check_branch
          %209 = sbr.rel (%p207) target = $region36
        $region35: #{tpu_custom_call.1} parent=31 // pred_region
          %211 = dma.done %s203, 128
        $region36: #{tpu_custom_call.1} parent=31 // pred_fallthru
          _
        %s212 = sand.u32 %s73, 1
        %s213 = scalar_lea.sflag [#allocation9], %s212
        %s214 = sand.u32 %s73, 1
        %s215 = smul.addr %s214, 8
        %s216 = scalar_lea.vmem [#allocation8], %s215
        // Predicated region
        $region37: #{tpu_custom_call.1} parent=31 // pred_check
          %p217 = pneg %p86
        $region38: #{tpu_custom_call.1} parent=31 // pred_check_branch
          %219 = sbr.rel (%p217) target = $region40
        $region39: #{tpu_custom_call.1} parent=31 // pred_region
          %221 = dma.done %s213, 128
        $region40: #{tpu_custom_call.1} parent=31 // pred_fallthru
          _
        %s222 = sand.u32 %s45, 1
        %s223 = scalar_lea.sflag [#allocation6], %s222
        %s224 = sand.u32 %s45, 1
        %s225 = smul.addr %s224, 8
        %s226 = scalar_lea.vmem [#allocation5], %s225
        %p227 = pneg %p58
        %p228 = pneg %p55
        %s229 = sand.u32 %s73, 1
        %s230 = scalar_lea.sflag [#allocation9], %s229
        %s231 = sand.u32 %s73, 1
        %s232 = smul.addr %s231, 8
        %s233 = scalar_lea.vmem [#allocation8], %s232
        %p234 = pneg %p86
        %p235 = pneg %p83
        %p236 = pneg %p107
        %p237 = pneg %p104
        %p238 = pneg %p133
        %p239 = pneg %p130
        %s240 = sand.u32 %s120, 1
        %s241 = scalar_lea.sflag [#allocation7], %s240
        %s242 = sand.u32 %s120, 1
        %s243 = scalar_lea.vmem [#allocation10], %s242
        %p244 = scmp.eq.s32.totalorder %s28, 0
        // Predicated region
        $region41: #{tpu_custom_call.1} parent=31 // pred_check
          %p245 = pneg %p244
        $region42: #{tpu_custom_call.1} parent=31 // pred_check_branch
          %247 = sbr.rel (%p245) target = $region44
        $region43: #{tpu_custom_call.1} parent=31 // pred_region
          %vm248 = vcmask 0
          %249 = vst.msk [vmem:[#allocation2] sm:$0x1] %vm248, -inf
          %250 = vst.msk [vmem:[#allocation3] sm:$0x1] %vm248, 0.0
          %vm251 = vcmask 253952
          %252 = vst.msk [vmem:[#allocation4] sm:$0x1] %vm251, 0.0
        $region44: #{tpu_custom_call.1} parent=31 // pred_fallthru
          _
        %v253 = vld [vmem:[%s206] sm:$0xff]
        %v254 = vld [vmem:[%s216] sm:$0xff]
        %v255 = vld [vmem:[%s2] sm:$0x1]
        %v257 = vperm.slane %v255, 0
        %v259 = vmul.f32 %v253, %v257
        %vm260 = vcmask 261120
        %v261 = vsel %vm260, %v259, 0.0
        %262 = vadd.xlane.f32.xlu0 %v261
        %v263 = vpop.xlane.xlu0 %262
        %v264 = vld [vmem:[#allocation2] sm:$0x1]
        %v265 = vrot.slane %v263, 4
        %v266 = vmax.f32 %v263, %v265
        %v267 = vrot.slane %v266, 2
        %v268 = vmax.f32 %v266, %v267
        %v269 = vrot.slane %v268, 1
        %v270 = vmax.f32 %v268, %v269
        %v271 = vmax.f32 %v264, %v270
        %v272 = vsub.f32 %v264, %v271
        %v273 = vmul.f32 %v272, 1.442695
        %v274 = vpow.pop %v273
        %v276 = vperm.slane %v271, 0
        %v278 = vsub.f32 %v263, %v276
        %v279 = vmul.f32 %v278, 1.442695
        %v280 = vpow.pop %v279
        %v281 = vld [vmem:[#allocation3] sm:$0x1]
        %v282 = vmul.f32 %v274, %v281
        %vm283 = vcmask 7168
        %v284 = vsel %vm283, %v280, 0.0
        %v285 = vrot.slane %v284, 4
        %v286 = vadd.f32 %v284, %v285
        %v287 = vrot.slane %v286, 2
        %v288 = vadd.f32 %v286, %v287
        %v289 = vrot.slane %v288, 1
        %v290 = vadd.f32 %v288, %v289
        %v291 = vadd.f32 %v282, %v290
        %vm292 = vcmask 0
        %293 = vst.msk [vmem:[#allocation3] sm:$0x1] %vm292, %v291
        %295 = vset.pattern.permute.xlu0 0
        %296 = vperm.xlu0 %295, %v280
        %v297 = vpop.permute.xlu0 %296
        %v299 = vmul.f32 %v297, %v254
        %v300 = vld [vmem:[#allocation4] sm:$0x1]
        %302 = vset.pattern.permute.xlu0 0
        %303 = vperm.xlu0 %302, %v274
        %v304 = vpop.permute.xlu0 %303
        %v306 = vperm.slane %v304, 0
        %v307 = vmul.f32 %v306, %v300
        %v308 = vsel %vm260, %v299, 0.0
        %v309 = vrot.slane %v308, 4
        %v310 = vadd.f32 %v308, %v309
        %v311 = vrot.slane %v310, 2
        %v312 = vadd.f32 %v310, %v311
        %v313 = vrot.slane %v312, 1
        %v314 = vadd.f32 %v312, %v313
        %v315 = vadd.f32 %v307, %v314
        %vm316 = vcmask 253952
        %317 = vst.msk [vmem:[#allocation4] sm:$0x1] %vm316, %v315
        %318 = vst.msk [vmem:[#allocation2] sm:$0x1] %vm292, %v271
        // Predicated region
        $region45: #{tpu_custom_call.1} parent=31 // pred_check
          %p319 = pneg %p244
        $region46: #{tpu_custom_call.1} parent=31 // pred_check_branch
          %321 = sbr.rel (%p319) target = $region48
        $region47: #{tpu_custom_call.1} parent=31 // pred_region
          %v322 = vld [vmem:[#allocation4] sm:$0x1]
          %v323 = vld [vmem:[#allocation3] sm:$0x1]
          %325 = vset.pattern.permute.xlu0 0
          %326 = vperm.xlu0 %325, %v323
          %v327 = vpop.permute.xlu0 %326
          %v329 = vperm.slane %v327, 0
          %v330 = vrcp.pop %v329
          %v331 = vmul.f32 %v329, %v330
          %v332 = vsub.f32 1.0, %v331
          %v333 = vmul.f32 %v330, %v332
          %v334 = vadd.f32 %v330, %v333
          %vm335 = vweird.f32 %v329
          %vm336 = vweird.f32 %v330
          %vm337 = vmor %vm335, %vm336
          %v338 = vsel %vm337, %v330, %v334
          %v339 = vand.u32 2147483647, %v329
          %vm340 = vcmp.eq.f32.partialorder %v339, 8.507059e+37
          %v341 = vand.u32 %v329, 2147483648
          %v342 = vor.u32 1.1754944e-38, %v341
          %v343 = vsel %vm340, %v342, %v338
          %v344 = vmul.f32 %v322, %v343
          %345 = vst.msk [vmem:[%s243] sm:$0x1] %vm316, %v344
        $region48: #{tpu_custom_call.1} parent=31 // pred_fallthru
          _
        %s346 = sand.u32 %s120, 1
        %s347 = scalar_lea.sflag [#allocation7], %s346
        %s348 = sand.u32 %s120, 1
        %s349 = scalar_lea.vmem [#allocation10], %s348
        // Predicated region
        $region49: #{tpu_custom_call.1} parent=31 // pred_check
          %p350 = pneg %p130
        $region50: #{tpu_custom_call.1} parent=31 // pred_check_branch
          %352 = sbr.rel (%p350) target = $region52
        $region51: #{tpu_custom_call.1} parent=31 // pred_region
          %354 = vsyncadd %s347, 0
          %s355 = scalar_lea.hbm %s3, %s27
          %s357 = sshll.u32 %s349, 4
          %s358 = int_to_ptr.vmem [resolvable:$true] %s357
          %s359 = sshll.u32 %s355, 4
          %s360 = int_to_ptr.hbm [resolvable:$true] %s359
          %362 = dma.vmem_to_hbm [thread:$0]  %s358, 16, %s360, %s347
        $region52: #{tpu_custom_call.1} parent=31 // pred_fallthru
          _
      $region32: #{tpu_custom_call.1} parent=5 // pred_fallthru
        _
      %p363 = scmp.le.s32.totalorder 2, %s18
      // Predicated region
      $region53: #{tpu_custom_call.1} parent=5 // pred_check
        %p364 = pneg %p363
      $region54: #{tpu_custom_call.1} parent=5 // pred_check_branch
        %366 = sbr.rel (%p364) target = $region56
      $region55: #{tpu_custom_call.1} parent=5 // pred_region
        %s367 = ssub.s32 %s18, 2
        // Predicated region
        $region57: #{tpu_custom_call.1} parent=55 // pred_check
          %p368 = pneg %p136
        $region58: #{tpu_custom_call.1} parent=55 // pred_check_branch
          %370 = sbr.rel (%p368) target = $region60
        $region59: #{tpu_custom_call.1} parent=55 // pred_region
          %s371 = sand.u32 %s121, 1
          %s372 = scalar_lea.sflag [#allocation7], %s371
          %s373 = sand.u32 %s121, 1
          %s374 = scalar_lea.vmem [#allocation10], %s373
          %376 = dma.done %s372, 16
        $region60: #{tpu_custom_call.1} parent=55 // pred_fallthru
          _
      $region56: #{tpu_custom_call.1} parent=5 // pred_fallthru
        _
    $region6: #{tpu_custom_call.1} parent=1 // loop_footer
      %s22 = sadd.s32 1, %s18
    $region7: #{tpu_custom_call.1} parent=1 // loop_footer_branch
      %17 = sbr.rel target = $region3
    $region8: #{tpu_custom_call.1} parent=1 // loop_exit
      _
    %377 = vsyncpa [#allocation6], 1
    %s378 = scalar_lea.sflag [#allocation6], 1
    %379 = vsyncpa %s378, 1
    %380 = vsyncpa [#allocation9], 1
    %s381 = scalar_lea.sflag [#allocation9], 1
    %382 = vsyncpa %s381, 1
    %383 = vsyncpa [#allocation7], 1
    %s384 = scalar_lea.sflag [#allocation7], 1
    %385 = vsyncpa %s384, 1

</llo_original>
